<compile_context>
chip_gen: v7x
topology: tpu7x:2x2x1
jax: 0.10.0
libtpu: 0.0.40
codegen_flags: <defaults>
</compile_context>

<pallas_src>
import functools

import jax
import jax.numpy as jnp
from jax.experimental import pallas as pl
from jax.experimental.pallas import tpu as pltpu

EPS = 1e-3  # BatchNorm2d(eps=0.001)


def _fused_kernel(x_ref, w1_ref, gb_ref, w2_ref, o_ref, *, inv_count):
    # x_ref:  (C_in,  P_pad) bf16  -- channel-major activations, lane-padded with zeros
    # w1_ref: (C_mid, C_in)  bf16  -- conv2d27 weight, PyTorch (out, in) layout
    # gb_ref: (C_mid, 2)     f32   -- column 0 = gamma, column 1 = beta
    # w2_ref: (C_out, C_mid) bf16  -- conv2d28 weight, PyTorch (out, in) layout
    # o_ref:  (C_out, P_pad) f32
    x = x_ref[...]

    # conv2d27: 1x1 conv == matmul over channels (MXU, bf16 in / f32 acc).
    h = jnp.dot(w1_ref[...], x, preferred_element_type=jnp.float32)  # (C_mid, P_pad) f32

    # batchnorm2d27 (training mode): biased per-channel stats over the true
    # N*H*W positions.  Padded columns of x are zero => padded columns of h are
    # zero => one-pass sums are unaffected; divide by the true count.
    s1 = jnp.sum(h, axis=1, keepdims=True)                            # (C_mid, 1)
    s2 = jnp.sum(h * h, axis=1, keepdims=True)                        # (C_mid, 1)
    mean = s1 * inv_count
    var = jnp.maximum(s2 * inv_count - mean * mean, 0.0)              # biased, clamped
    inv_std = jax.lax.rsqrt(var + EPS)

    gamma = gb_ref[:, 0:1]                                            # (C_mid, 1)
    beta = gb_ref[:, 1:2]                                             # (C_mid, 1)
    scale = gamma * inv_std
    shift = beta - mean * scale
    hn = h * scale + shift                                            # lane broadcast, f32

    # conv2d28: 1x1 conv == matmul over channels (MXU, bf16 in / f32 acc).
    o_ref[...] = jnp.dot(w2_ref[...], hn.astype(w2_ref.dtype),
                         preferred_element_type=jnp.float32)


def fused_conv_bn_conv(x_nchw, w1, gamma, beta, w2):
    """x_nchw: (N, C_in, H, W) f32.  w1: (C_mid, C_in), w2: (C_out, C_mid)
    (PyTorch conv weight layout, 1x1 spatial dims squeezed).
    Returns (N, C_out, H, W) f32 (forward of conv -> train-mode BN -> conv)."""
    n, c_in, h, w = x_nchw.shape
    c_mid = w1.shape[0]
    c_out = w2.shape[0]
    p = n * h * w
    p_pad = ((p + 127) // 128) * 128  # lane-dense (multiple of 128)

    # Channel-major flatten (free reshape for N == 1).
    if n == 1:
        x_cp = x_nchw.reshape(c_in, p)
    else:
        # TODO(synk): for N>1, put N on a grid axis with VMEM stat accumulation
        # instead of this HBM transpose.
        x_cp = jnp.moveaxis(x_nchw, 1, 0).reshape(c_in, p)

    # Zero-pad the position axis and cast MXU operands to bf16.
    x_pad = jnp.pad(x_cp, ((0, 0), (0, p_pad - p))).astype(jnp.bfloat16)
    w1b = w1.astype(jnp.bfloat16)
    w2b = w2.astype(jnp.bfloat16)
    gb = jnp.stack([gamma, beta], axis=1).astype(jnp.float32)  # (C_mid, 2)

    flops = 2 * p * c_mid * (c_in + c_out) + 6 * c_mid * p
    bytes_accessed = (x_pad.size * 2 + c_out * p_pad * 4
                      + w1b.size * 2 + w2b.size * 2 + gb.size * 4)
    cost = pl.CostEstimate(flops=flops, transcendentals=0,
                           bytes_accessed=bytes_accessed)

    out_cp = pl.pallas_call(
        functools.partial(_fused_kernel, inv_count=1.0 / p),
        out_shape=jax.ShapeDtypeStruct((c_out, p_pad), jnp.float32),
        grid=(1,),
        in_specs=[
            pl.BlockSpec((c_in, p_pad), lambda i: (0, 0)),
            pl.BlockSpec((c_mid, c_in), lambda i: (0, 0)),
            pl.BlockSpec((c_mid, 2), lambda i: (0, 0)),
            pl.BlockSpec((c_out, c_mid), lambda i: (0, 0)),
        ],
        out_specs=pl.BlockSpec((c_out, p_pad), lambda i: (0, 0)),
        compiler_params=pltpu.CompilerParams(
            dimension_semantics=("arbitrary",)),
        cost_estimate=cost,
    )(x_pad, w1b, gb, w2b)

    out_cp = out_cp[:, :p]  # drop lane padding

    # (C_out, P) -> NCHW (free reshape for N == 1).
    if n == 1:
        return out_cp.reshape(n, c_out, h, w)
    return jnp.moveaxis(out_cp.reshape(c_out, n, h, w), 0, 1)


if __name__ == "__main__":
    key = jax.random.PRNGKey(0)
    k_x, k_w1, k_w2, k_g, k_b = jax.random.split(key, 5)

    N, C_IN, H, W = 1, 192, 14, 14
    C_MID, C_OUT = 64, 192

    # Deterministic synthetic parameters in PyTorch-native layouts
    # (conv weights are (out_ch, in_ch) with 1x1 spatial dims squeezed).
    x = jax.random.normal(k_x, (N, C_IN, H, W), dtype=jnp.float32)
    w1 = jax.random.normal(k_w1, (C_MID, C_IN), dtype=jnp.float32) * 0.05
    w2 = jax.random.normal(k_w2, (C_OUT, C_MID), dtype=jnp.float32) * 0.05
    gamma = 1.0 + 0.1 * jax.random.normal(k_g, (C_MID,), dtype=jnp.float32)
    beta = 0.1 * jax.random.normal(k_b, (C_MID,), dtype=jnp.float32)

    out = fused_conv_bn_conv(x, w1, gamma, beta, w2)
    jax.block_until_ready(out)
    assert out.shape == (N, C_OUT, H, W), out.shape

    # Pure-f32 reference of the same (PyTorch) math: conv -> train-mode BN -> conv.
    x_flat = x.reshape(C_IN, -1)                      # (192, 196), N == 1
    h_ref = w1 @ x_flat                               # (64, 196)
    mu = h_ref.mean(axis=1, keepdims=True)
    var = ((h_ref - mu) ** 2).mean(axis=1, keepdims=True)
    hn_ref = (h_ref - mu) / jnp.sqrt(var + EPS) * gamma[:, None] + beta[:, None]
    ref = (w2 @ hn_ref).reshape(N, C_OUT, H, W)

    # bf16 MXU operands -> loosened tolerance vs the pure-f32 reference.
    max_err = float(jnp.max(jnp.abs(out - ref)))
    assert jnp.allclose(out, ref, atol=3e-2, rtol=3e-2), max_err

    print("KERNEL_OK")
</pallas_src>

<mosaic_0001>
module attributes {stable_mosaic.version = 11 : i64} {
  func.func @_fused_kernel(%arg0: i32, %arg1: memref<192x256xbf16, #tpu.memory_space<vmem>>, %arg2: memref<64x192xbf16, #tpu.memory_space<vmem>>, %arg3: memref<64x2xf32, #tpu.memory_space<vmem>>, %arg4: memref<192x64xbf16, #tpu.memory_space<vmem>>, %arg5: memref<192x256xf32, #tpu.memory_space<vmem>>) attributes {dimension_semantics = [#tpu.dimension_semantics<arbitrary>], iteration_bounds = array<i64: 1>, scalar_prefetch = 0 : i64, scratch_operands = 0 : i64, tpu.core_type = #tpu.core_type<tc>, window_params = [{pipeline_mode = #tpu.pipeline_mode<synchronous>, transform_indices = @transform_0, window_bounds = array<i64: 192, 256>}, {pipeline_mode = #tpu.pipeline_mode<synchronous>, transform_indices = @transform_1, window_bounds = array<i64: 64, 192>}, {pipeline_mode = #tpu.pipeline_mode<synchronous>, transform_indices = @transform_2, window_bounds = array<i64: 64, 2>}, {pipeline_mode = #tpu.pipeline_mode<synchronous>, transform_indices = @transform_3, window_bounds = array<i64: 192, 64>}, {pipeline_mode = #tpu.pipeline_mode<synchronous>, transform_indices = @transform_4, window_bounds = array<i64: 192, 256>}]} {
    %c0 = arith.constant 0 : index
    %c0_0 = arith.constant 0 : index
    %0 = vector.load %arg1[%c0, %c0_0] : memref<192x256xbf16, #tpu.memory_space<vmem>>, vector<192x256xbf16>
    %c0_1 = arith.constant 0 : index
    %c0_2 = arith.constant 0 : index
    %1 = vector.load %arg2[%c0_1, %c0_2] : memref<64x192xbf16, #tpu.memory_space<vmem>>, vector<64x192xbf16>
    %cst = arith.constant dense<0.000000e+00> : vector<64x256xf32>
    %2 = tpu.matmul %1, %0, %cst {dimension_numbers = #tpu.dot_dimension_numbers<[1], [0], [0], [1], [0, 0, 1, 1], [], []>} : vector<64x192xbf16>, vector<192x256xbf16>, vector<64x256xf32> -> vector<64x256xf32>
    %cst_3 = arith.constant dense<0.000000e+00> : vector<64xf32>
    %3 = vector.multi_reduction <add>, %2, %cst_3 [1] : vector<64x256xf32> to vector<64xf32>
    %4 = vector.shape_cast %3 : vector<64xf32> to vector<64x1xf32>
    %5 = arith.mulf %2, %2 : vector<64x256xf32>
    %cst_4 = arith.constant dense<0.000000e+00> : vector<64xf32>
    %6 = vector.multi_reduction <add>, %5, %cst_4 [1] : vector<64x256xf32> to vector<64xf32>
    %7 = vector.shape_cast %6 : vector<64xf32> to vector<64x1xf32>
    %cst_5 = arith.constant 0.00510204071 : f32
    %8 = vector.broadcast %cst_5 : f32 to vector<64x1xf32>
    %9 = arith.mulf %4, %8 : vector<64x1xf32>
    %cst_6 = arith.constant 0.00510204071 : f32
    %10 = vector.broadcast %cst_6 : f32 to vector<64x1xf32>
    %11 = arith.mulf %7, %10 : vector<64x1xf32>
    %12 = arith.mulf %9, %9 : vector<64x1xf32>
    %13 = arith.subf %11, %12 : vector<64x1xf32>
    %cst_7 = arith.constant 0.000000e+00 : f32
    %14 = vector.broadcast %cst_7 : f32 to vector<64x1xf32>
    %15 = arith.maximumf %13, %14 : vector<64x1xf32>
    %cst_8 = arith.constant 1.000000e-03 : f32
    %16 = vector.broadcast %cst_8 : f32 to vector<64x1xf32>
    %17 = arith.addf %15, %16 : vector<64x1xf32>
    %18 = math.rsqrt %17 : vector<64x1xf32>
    %c0_9 = arith.constant 0 : index
    %c0_10 = arith.constant 0 : index
    %19 = vector.load %arg3[%c0_9, %c0_10] : memref<64x2xf32, #tpu.memory_space<vmem>>, vector<64x1xf32>
    %c0_11 = arith.constant 0 : index
    %c1 = arith.constant 1 : index
    %20 = vector.load %arg3[%c0_11, %c1] : memref<64x2xf32, #tpu.memory_space<vmem>>, vector<64x1xf32>
    %21 = arith.mulf %19, %18 : vector<64x1xf32>
    %22 = arith.mulf %9, %21 : vector<64x1xf32>
    %23 = arith.subf %20, %22 : vector<64x1xf32>
    %24 = vector.broadcast %21 : vector<64x1xf32> to vector<64x256xf32>
    %25 = arith.mulf %2, %24 : vector<64x256xf32>
    %26 = vector.broadcast %23 : vector<64x1xf32> to vector<64x256xf32>
    %27 = arith.addf %25, %26 : vector<64x256xf32>
    %c0_12 = arith.constant 0 : index
    %c0_13 = arith.constant 0 : index
    %28 = vector.load %arg4[%c0_12, %c0_13] : memref<192x64xbf16, #tpu.memory_space<vmem>>, vector<192x64xbf16>
    %29 = arith.truncf %27 : vector<64x256xf32> to vector<64x256xbf16>
    %cst_14 = arith.constant dense<0.000000e+00> : vector<192x256xf32>
    %30 = tpu.matmul %28, %29, %cst_14 {dimension_numbers = #tpu.dot_dimension_numbers<[1], [0], [0], [1], [0, 0, 1, 1], [], []>} : vector<192x64xbf16>, vector<64x256xbf16>, vector<192x256xf32> -> vector<192x256xf32>
    %c0_15 = arith.constant 0 : index
    %c0_16 = arith.constant 0 : index
    %31 = vector.load %arg5[%c0_15, %c0_16] : memref<192x256xf32, #tpu.memory_space<vmem>>, vector<192x256xf32>
    tpu.vector_store %arg5[%c0_15, %c0_16], %30 {strides = array<i32>} : memref<192x256xf32, #tpu.memory_space<vmem>>, vector<192x256xf32>,
    return
  }
  func.func @transform_0(%arg0: i32) -> (i32, i32) {
    %c0_i32 = arith.constant 0 : i32
    %c0_i32_0 = arith.constant 0 : i32
    %c0_i32_1 = arith.constant 0 : i32
    return %c0_i32, %c0_i32_0 : i32, i32
  }
  func.func @transform_1(%arg0: i32) -> (i32, i32) {
    %c0_i32 = arith.constant 0 : i32
    %c0_i32_0 = arith.constant 0 : i32
    %c0_i32_1 = arith.constant 0 : i32
    return %c0_i32, %c0_i32_0 : i32, i32
  }
  func.func @transform_2(%arg0: i32) -> (i32, i32) {
    %c0_i32 = arith.constant 0 : i32
    %c0_i32_0 = arith.constant 0 : i32
    %c0_i32_1 = arith.constant 0 : i32
    return %c0_i32, %c0_i32_0 : i32, i32
  }
  func.func @transform_3(%arg0: i32) -> (i32, i32) {
    %c0_i32 = arith.constant 0 : i32
    %c0_i32_0 = arith.constant 0 : i32
    %c0_i32_1 = arith.constant 0 : i32
    return %c0_i32, %c0_i32_0 : i32, i32
  }
  func.func @transform_4(%arg0: i32) -> (i32, i32) {
    %c0_i32 = arith.constant 0 : i32
    %c0_i32_0 = arith.constant 0 : i32
    %c0_i32_1 = arith.constant 0 : i32
    return %c0_i32, %c0_i32_0 : i32, i32
  }
}

</mosaic_0001>

<llo_original>
// kernel: tpu_custom_call.1
$region0: #{tpu_custom_call.1}
  #allocation0 [shape = 'u32[]', space=smem, size = 0x4, offset = 0x4, fixed_abs, tag = 'smem constant byte address 0x4 - core index']
  #allocation1 [shape = 'u32[144,128]{1,0:T(1,128)}', space=vmem, size = 0x12000, scoped, tag = 'internal scratch']
  %s0 = inlined_call_operand.vmem [shape: bf16[192,256], index: 0, kind: input, shape index: {}]
  %s1 = inlined_call_operand.hbm [shape: bf16[64,192], index: 1, kind: input, shape index: {}]
  %s2 = inlined_call_operand.vmem [shape: f32[64,2], index: 2, kind: input, shape index: {}]
  %s3 = inlined_call_operand.vmem [shape: bf16[192,64], index: 3, kind: input, shape index: {}]
  %s4 = inlined_call_operand.hbm [shape: f32[192,256], index: 4, kind: output, shape index: {}]
  %s5 = sld [smem:[#allocation0]]
  $region30: #{tpu_custom_call.1} parent=0
    _
  %s7 = ssub.s32 1, %s5
  %s8 = scalar_select 0, %s7, %s5
  $region1: #{tpu_custom_call.1} parent=0
    #allocation2 [shape = 'u8[32768]{0}', space=vmem, size = 0x8000, scoped, tag = 'input window, operand 1, single buffered']
    #allocation3 [shape = 's32[1]{0}', space=sflag, size = 0x4, scoped, tag = 'scoped memory for tpu_custom_call.1']
    #allocation4 [shape = 's32[1]{0}', space=sflag, size = 0x4, scoped, tag = 'scoped memory for tpu_custom_call.1']
    #allocation5 [shape = 'u8[196608]{0}', space=vmem, size = 0x30000, scoped, tag = 'output window, operand 0, single buffered']
    %9 = vsyncpa [#allocation3], 0
    %10 = vsyncpa [#allocation4], 0
    // Predicated region
    $region2: #{tpu_custom_call.1} parent=1 // pred_check
      _
    $region3: #{tpu_custom_call.1} parent=1 // pred_check_branch
      %12 = sbr.rel (0) target = $region5
    $region4: #{tpu_custom_call.1} parent=1 // pred_region
      _
    $region5: #{tpu_custom_call.1} parent=1 // pred_fallthru
      _
    // Predicated region
    $region6: #{tpu_custom_call.1} parent=1 // pred_check
      _
    $region7: #{tpu_custom_call.1} parent=1 // pred_check_branch
      %14 = sbr.rel (0) target = $region9
    $region8: #{tpu_custom_call.1} parent=1 // pred_region
      %s16 = ssub.s32 1024, 1024
      %17 = vsyncadd [#allocation3], %s16
      %s18 = sshll.u32 [#allocation2], 4
      %s19 = int_to_ptr.vmem [resolvable:$true] %s18
      %24 = dma.hbm_to_vmem [thread:$0]  %s1, 1024, %s19, [#allocation3], 128, 128, 8
    $region9: #{tpu_custom_call.1} parent=1 // pred_fallthru
      _
    // Predicated region
    $region10: #{tpu_custom_call.1} parent=1 // pred_check
      _
    $region11: #{tpu_custom_call.1} parent=1 // pred_check_branch
      %26 = sbr.rel (0) target = $region13
    $region12: #{tpu_custom_call.1} parent=1 // pred_region
      _
    $region13: #{tpu_custom_call.1} parent=1 // pred_fallthru
      _
    // Predicated region
    $region14: #{tpu_custom_call.1} parent=1 // pred_check
      _
    $region15: #{tpu_custom_call.1} parent=1 // pred_check_branch
      %28 = sbr.rel (0) target = $region17
    $region16: #{tpu_custom_call.1} parent=1 // pred_region
      _
    $region17: #{tpu_custom_call.1} parent=1 // pred_fallthru
      _
    // Predicated region
    $region18: #{tpu_custom_call.1} parent=1 // pred_check
      _
    $region19: #{tpu_custom_call.1} parent=1 // pred_check_branch
      %30 = sbr.rel (0) target = $region21
    $region20: #{tpu_custom_call.1} parent=1 // pred_region
      %31 = dma.done [#allocation3], 1024
    $region21: #{tpu_custom_call.1} parent=1 // pred_fallthru
      _
    %v33 = vld [vmem:[%s0] sm:$0xff]
    %v34 = vld [vmem:[%s0 + $0x8] sm:$0xff]
    %v35 = vld [vmem:[%s0 + $0x10] sm:$0xff]
    %v36 = vld [vmem:[%s0 + $0x18] sm:$0xff]
    %v37 = vld [vmem:[%s0 + $0x20] sm:$0xff]
    %v38 = vld [vmem:[%s0 + $0x28] sm:$0xff]
    %v39 = vld [vmem:[%s0 + $0x30] sm:$0xff]
    %v40 = vld [vmem:[%s0 + $0x38] sm:$0xff]
    %v41 = vld [vmem:[%s0 + $0x40] sm:$0xff]
    %v42 = vld [vmem:[%s0 + $0x48] sm:$0xff]
    %v43 = vld [vmem:[%s0 + $0x50] sm:$0xff]
    %v44 = vld [vmem:[%s0 + $0x58] sm:$0xff]
    %v45 = vld [vmem:[%s0 + $0x60] sm:$0xff]
    %v46 = vld [vmem:[%s0 + $0x68] sm:$0xff]
    %v47 = vld [vmem:[%s0 + $0x70] sm:$0xff]
    %v48 = vld [vmem:[%s0 + $0x78] sm:$0xff]
    %v49 = vld [vmem:[%s0 + $0x80] sm:$0xff]
    %v50 = vld [vmem:[%s0 + $0x88] sm:$0xff]
    %v51 = vld [vmem:[%s0 + $0x90] sm:$0xff]
    %v52 = vld [vmem:[%s0 + $0x98] sm:$0xff]
    %v53 = vld [vmem:[%s0 + $0xa0] sm:$0xff]
    %v54 = vld [vmem:[%s0 + $0xa8] sm:$0xff]
    %v55 = vld [vmem:[%s0 + $0xb0] sm:$0xff]
    %v56 = vld [vmem:[%s0 + $0xb8] sm:$0xff]
    %v57 = vld [vmem:[#allocation2] sm:$0xff]
    %v58 = vld [vmem:[#allocation2 + $0x8] sm:$0xff]
    %v59 = vld [vmem:[#allocation2 + $0x10] sm:$0xff]
    %v60 = vld [vmem:[#allocation2 + $0x18] sm:$0xff]
    %v61 = vld [vmem:[#allocation2 + $0x20] sm:$0xff]
    %v62 = vld [vmem:[#allocation2 + $0x28] sm:$0xff]
    %v63 = vld [vmem:[#allocation2 + $0x30] sm:$0xff]
    %v64 = vld [vmem:[#allocation2 + $0x38] sm:$0xff]
    %v73 = vunpack.c.l.b16 %v57
    %v74 = vunpack.c.h.b16 %v57
    %v75 = vunpack.c.l.b16 %v58
    %v76 = vunpack.c.h.b16 %v58
    %v77 = vunpack.c.l.b16 %v59
    %v78 = vunpack.c.h.b16 %v59
    %v79 = vunpack.c.l.b16 %v60
    %v80 = vunpack.c.h.b16 %v60
    %v81 = vunpack.c.l.b16 %v61
    %v82 = vunpack.c.h.b16 %v61
    %v83 = vunpack.c.l.b16 %v62
    %v84 = vunpack.c.h.b16 %v62
    %v85 = vunpack.c.l.b16 %v63
    %v86 = vunpack.c.h.b16 %v63
    %v87 = vunpack.c.l.b16 %v64
    %v88 = vunpack.c.h.b16 %v64
    %v89 = vpack.c.b16 %v75, %v73
    %v90 = vpack.c.b16 %v76, %v74
    %v91 = vpack.c.b16 %v79, %v77
    %v92 = vpack.c.b16 %v80, %v78
    %v93 = vpack.c.b16 %v83, %v81
    %v94 = vpack.c.b16 %v84, %v82
    %v95 = vpack.c.b16 %v87, %v85
    %v96 = vpack.c.b16 %v88, %v86
    %v125 = vunpack.c.l.b16 %v33
    %v126 = vunpack.c.h.b16 %v33
    %v127 = vunpack.c.l.b16 %v34
    %v128 = vunpack.c.h.b16 %v34
    %v129 = vunpack.c.l.b16 %v35
    %v130 = vunpack.c.h.b16 %v35
    %v131 = vunpack.c.l.b16 %v36
    %v132 = vunpack.c.h.b16 %v36
    %v133 = vunpack.c.l.b16 %v37
    %v134 = vunpack.c.h.b16 %v37
    %v135 = vunpack.c.l.b16 %v38
    %v136 = vunpack.c.h.b16 %v38
    %v137 = vunpack.c.l.b16 %v39
    %v138 = vunpack.c.h.b16 %v39
    %v139 = vunpack.c.l.b16 %v40
    %v140 = vunpack.c.h.b16 %v40
    %v141 = vunpack.c.l.b16 %v41
    %v142 = vunpack.c.h.b16 %v41
    %v143 = vunpack.c.l.b16 %v42
    %v144 = vunpack.c.h.b16 %v42
    %v145 = vunpack.c.l.b16 %v43
    %v146 = vunpack.c.h.b16 %v43
    %v147 = vunpack.c.l.b16 %v44
    %v148 = vunpack.c.h.b16 %v44
    %v149 = vunpack.c.l.b16 %v45
    %v150 = vunpack.c.h.b16 %v45
    %v151 = vunpack.c.l.b16 %v46
    %v152 = vunpack.c.h.b16 %v46
    %v153 = vunpack.c.l.b16 %v47
    %v154 = vunpack.c.h.b16 %v47
    %v155 = vunpack.c.l.b16 %v48
    %v156 = vunpack.c.h.b16 %v48
    %v157 = vunpack.c.l.b16 %v49
    %v158 = vunpack.c.h.b16 %v49
    %v159 = vunpack.c.l.b16 %v50
    %v160 = vunpack.c.h.b16 %v50
    %v161 = vunpack.c.l.b16 %v51
    %v162 = vunpack.c.h.b16 %v51
    %v163 = vunpack.c.l.b16 %v52
    %v164 = vunpack.c.h.b16 %v52
    %v165 = vunpack.c.l.b16 %v53
    %v166 = vunpack.c.h.b16 %v53
    %v167 = vunpack.c.l.b16 %v54
    %v168 = vunpack.c.h.b16 %v54
    %v169 = vunpack.c.l.b16 %v55
    %v170 = vunpack.c.h.b16 %v55
    %v171 = vunpack.c.l.b16 %v56
    %v172 = vunpack.c.h.b16 %v56
    %v173 = vpack.c.b16 %v127, %v125
    %v174 = vpack.c.b16 %v128, %v126
    %v175 = vpack.c.b16 %v131, %v129
    %v176 = vpack.c.b16 %v132, %v130
    %v177 = vpack.c.b16 %v135, %v133
    %v178 = vpack.c.b16 %v136, %v134
    %v179 = vpack.c.b16 %v139, %v137
    %v180 = vpack.c.b16 %v140, %v138
    %v181 = vpack.c.b16 %v143, %v141
    %v182 = vpack.c.b16 %v144, %v142
    %v183 = vpack.c.b16 %v147, %v145
    %v184 = vpack.c.b16 %v148, %v146
    %v185 = vpack.c.b16 %v151, %v149
    %v186 = vpack.c.b16 %v152, %v150
    %v187 = vpack.c.b16 %v155, %v153
    %v188 = vpack.c.b16 %v156, %v154
    %v189 = vpack.c.b16 %v159, %v157
    %v190 = vpack.c.b16 %v160, %v158
    %v191 = vpack.c.b16 %v163, %v161
    %v192 = vpack.c.b16 %v164, %v162
    %v193 = vpack.c.b16 %v167, %v165
    %v194 = vpack.c.b16 %v168, %v166
    %v195 = vpack.c.b16 %v171, %v169
    %v196 = vpack.c.b16 %v172, %v170
    %vm221 = vcmask 523264
    %v223 = vsel %vm221, %v90, 0
    %v226 = vsel %vm221, %v92, 0
    %v229 = vsel %vm221, %v94, 0
    %v232 = vsel %vm221, %v96, 0
    %234 = vmatprep.subr.bf16.mxu0 %v174
    %235 = vmatpush1.bf16.msra.mxu0 %v173
    %236 = vmatprep.subr.bf16.mxu0 %v176
    %237 = vmatpush1.bf16.msra.mxu0 %v175
    %238 = vmatprep.subr.bf16.mxu0 %v178
    %239 = vmatpush1.bf16.msra.mxu0 %v177
    %240 = vmatprep.subr.bf16.mxu0 %v180
    %241 = vmatpush1.bf16.msra.mxu0 %v179
    %242 = vmatprep.subr.bf16.mxu0 %v182
    %243 = vmatpush1.bf16.msra.mxu0 %v181
    %244 = vmatprep.subr.bf16.mxu0 %v184
    %245 = vmatpush1.bf16.msra.mxu0 %v183
    %246 = vmatprep.subr.bf16.mxu0 %v186
    %247 = vmatpush1.bf16.msra.mxu0 %v185
    %248 = vmatprep.subr.bf16.mxu0 %v188
    %249 = vmatpush1.bf16.msra.mxu0 %v187
    %250 = vmatprep.subr.bf16.mxu0 %v190
    %251 = vmatpush1.bf16.msra.mxu0 %v189
    %252 = vmatprep.subr.bf16.mxu0 %v192
    %253 = vmatpush1.bf16.msra.mxu0 %v191
    %254 = vmatprep.subr.bf16.mxu0 %v194
    %255 = vmatpush1.bf16.msra.mxu0 %v193
    %256 = vmatprep.subr.bf16.mxu0 %v196
    %257 = vmatpush1.bf16.msra.mxu0 %v195
    %258 = vmatprep.subr.bf16.mxu0 0
    %259 = vmatpush1.bf16.msra.mxu0 0
    %260 = vmatprep.subr.bf16.mxu0 0
    %261 = vmatpush1.bf16.msra.mxu0 0
    %262 = vmatprep.subr.bf16.mxu0 0
    %263 = vmatpush1.bf16.msra.mxu0 0
    %264 = vmatprep.subr.bf16.mxu0 0
    %265 = vmatpush1.bf16.msra.mxu0 0
    %266 = vmatprep.mubr.bf16.mxu0 %v223
    %267 = vmatmul.mubr.bf16.gmra.mrb[0].mxu0 %v89
    %v268 = vpop.f32.mrb[0].mxu0
    %v269 = vadd.f32 0.0, %v268
    %v270 = vpop.f32.mrb[0].mxu0
    %v271 = vadd.f32 0.0, %v270
    %v272 = vpop.f32.mrb[0].mxu0
    %v273 = vadd.f32 0.0, %v272
    %v274 = vpop.f32.mrb[0].mxu0
    %v275 = vadd.f32 0.0, %v274
    %276 = vmatprep.mubr.bf16.mxu0 %v226
    %277 = vmatmul.mubr.bf16.gmra.mrb[0].mxu0 %v91
    %v278 = vpop.f32.mrb[0].mxu0
    %v279 = vadd.f32 0.0, %v278
    %v280 = vpop.f32.mrb[0].mxu0
    %v281 = vadd.f32 0.0, %v280
    %v282 = vpop.f32.mrb[0].mxu0
    %v283 = vadd.f32 0.0, %v282
    %v284 = vpop.f32.mrb[0].mxu0
    %v285 = vadd.f32 0.0, %v284
    %286 = vmatprep.mubr.bf16.mxu0 %v229
    %287 = vmatmul.mubr.bf16.gmra.mrb[0].mxu0 %v93
    %v288 = vpop.f32.mrb[0].mxu0
    %v289 = vadd.f32 0.0, %v288
    %v290 = vpop.f32.mrb[0].mxu0
    %v291 = vadd.f32 0.0, %v290
    %v292 = vpop.f32.mrb[0].mxu0
    %v293 = vadd.f32 0.0, %v292
    %v294 = vpop.f32.mrb[0].mxu0
    %v295 = vadd.f32 0.0, %v294
    %296 = vmatprep.mubr.bf16.mxu0 %v232
    %297 = vmatmul.mubr.bf16.gmra.mrb[0].mxu0 %v95
    %v298 = vpop.f32.mrb[0].mxu0
    %v299 = vadd.f32 0.0, %v298
    %v300 = vpop.f32.mrb[0].mxu0
    %v301 = vadd.f32 0.0, %v300
    %v302 = vpop.f32.mrb[0].mxu0
    %v303 = vadd.f32 0.0, %v302
    %v304 = vpop.f32.mrb[0].mxu0
    %v305 = vadd.f32 0.0, %v304
    %306 = vdwg.mxu0
    %v307 = vadd.f32 %v269, %v271
    %308 = vadd.xlane.f32.xlu0 %v307
    %v309 = vpop.xlane.xlu0 %308
    %v310 = vadd.f32 %v273, %v275
    %311 = vadd.xlane.f32.xlu0 %v310
    %v312 = vpop.xlane.xlu0 %311
    %v313 = vadd.f32 %v279, %v281
    %314 = vadd.xlane.f32.xlu0 %v313
    %v315 = vpop.xlane.xlu0 %314
    %v316 = vadd.f32 %v283, %v285
    %317 = vadd.xlane.f32.xlu0 %v316
    %v318 = vpop.xlane.xlu0 %317
    %v319 = vadd.f32 %v289, %v291
    %320 = vadd.xlane.f32.xlu0 %v319
    %v321 = vpop.xlane.xlu0 %320
    %v322 = vadd.f32 %v293, %v295
    %323 = vadd.xlane.f32.xlu0 %v322
    %v324 = vpop.xlane.xlu0 %323
    %v325 = vadd.f32 %v299, %v301
    %326 = vadd.xlane.f32.xlu0 %v325
    %v327 = vpop.xlane.xlu0 %326
    %v328 = vadd.f32 %v303, %v305
    %329 = vadd.xlane.f32.xlu0 %v328
    %v330 = vpop.xlane.xlu0 %329
    %v331 = vmul.f32 %v269, %v269
    %v332 = vmul.f32 %v271, %v271
    %v333 = vmul.f32 %v273, %v273
    %v334 = vmul.f32 %v275, %v275
    %v335 = vmul.f32 %v279, %v279
    %v336 = vmul.f32 %v281, %v281
    %v337 = vmul.f32 %v283, %v283
    %v338 = vmul.f32 %v285, %v285
    %v339 = vmul.f32 %v289, %v289
    %v340 = vmul.f32 %v291, %v291
    %v341 = vmul.f32 %v293, %v293
    %v342 = vmul.f32 %v295, %v295
    %v343 = vmul.f32 %v299, %v299
    %v344 = vmul.f32 %v301, %v301
    %v345 = vmul.f32 %v303, %v303
    %v346 = vmul.f32 %v305, %v305
    %v347 = vadd.f32 %v331, %v332
    %348 = vadd.xlane.f32.xlu0 %v347
    %v349 = vpop.xlane.xlu0 %348
    %v350 = vadd.f32 %v333, %v334
    %351 = vadd.xlane.f32.xlu0 %v350
    %v352 = vpop.xlane.xlu0 %351
    %v353 = vadd.f32 %v335, %v336
    %354 = vadd.xlane.f32.xlu0 %v353
    %v355 = vpop.xlane.xlu0 %354
    %v356 = vadd.f32 %v337, %v338
    %357 = vadd.xlane.f32.xlu0 %v356
    %v358 = vpop.xlane.xlu0 %357
    %v359 = vadd.f32 %v339, %v340
    %360 = vadd.xlane.f32.xlu0 %v359
    %v361 = vpop.xlane.xlu0 %360
    %v362 = vadd.f32 %v341, %v342
    %363 = vadd.xlane.f32.xlu0 %v362
    %v364 = vpop.xlane.xlu0 %363
    %v365 = vadd.f32 %v343, %v344
    %366 = vadd.xlane.f32.xlu0 %v365
    %v367 = vpop.xlane.xlu0 %366
    %v368 = vadd.f32 %v345, %v346
    %369 = vadd.xlane.f32.xlu0 %v368
    %v370 = vpop.xlane.xlu0 %369
    %v371 = vmul.f32 %v309, 0.0051020407
    %v372 = vmul.f32 %v312, 0.0051020407
    %v373 = vmul.f32 %v315, 0.0051020407
    %v374 = vmul.f32 %v318, 0.0051020407
    %v375 = vmul.f32 %v321, 0.0051020407
    %v376 = vmul.f32 %v324, 0.0051020407
    %v377 = vmul.f32 %v327, 0.0051020407
    %v378 = vmul.f32 %v330, 0.0051020407
    %v379 = vmul.f32 %v349, 0.0051020407
    %v380 = vmul.f32 %v352, 0.0051020407
    %v381 = vmul.f32 %v355, 0.0051020407
    %v382 = vmul.f32 %v358, 0.0051020407
    %v383 = vmul.f32 %v361, 0.0051020407
    %v384 = vmul.f32 %v364, 0.0051020407
    %v385 = vmul.f32 %v367, 0.0051020407
    %v386 = vmul.f32 %v370, 0.0051020407
    %v387 = vmul.f32 %v371, %v371
    %v388 = vmul.f32 %v372, %v372
    %v389 = vmul.f32 %v373, %v373
    %v390 = vmul.f32 %v374, %v374
    %v391 = vmul.f32 %v375, %v375
    %v392 = vmul.f32 %v376, %v376
    %v393 = vmul.f32 %v377, %v377
    %v394 = vmul.f32 %v378, %v378
    %v395 = vsub.f32 %v379, %v387
    %v396 = vsub.f32 %v380, %v388
    %v397 = vsub.f32 %v381, %v389
    %v398 = vsub.f32 %v382, %v390
    %v399 = vsub.f32 %v383, %v391
    %v400 = vsub.f32 %v384, %v392
    %v401 = vsub.f32 %v385, %v393
    %v402 = vsub.f32 %v386, %v394
    %v403 = vmax.f32 %v395, 0.0
    %v404 = vmax.f32 %v396, 0.0
    %v405 = vmax.f32 %v397, 0.0
    %v406 = vmax.f32 %v398, 0.0
    %v407 = vmax.f32 %v399, 0.0
    %v408 = vmax.f32 %v400, 0.0
    %v409 = vmax.f32 %v401, 0.0
    %v410 = vmax.f32 %v402, 0.0
    %v411 = vadd.f32 %v403, 0.001
    %v412 = vadd.f32 %v404, 0.001
    %v413 = vadd.f32 %v405, 0.001
    %v414 = vadd.f32 %v406, 0.001
    %v415 = vadd.f32 %v407, 0.001
    %v416 = vadd.f32 %v408, 0.001
    %v417 = vadd.f32 %v409, 0.001
    %v418 = vadd.f32 %v410, 0.001
    %v419 = vrsqrt.pop %v411
    %v420 = vrsqrt.pop %v412
    %v421 = vrsqrt.pop %v413
    %v422 = vrsqrt.pop %v414
    %v423 = vrsqrt.pop %v415
    %v424 = vrsqrt.pop %v416
    %v425 = vrsqrt.pop %v417
    %v426 = vrsqrt.pop %v418
    %v427 = vld [vmem:[%s2] sm:$0xff]
    %v428 = vld [vmem:[%s2 + $0x8] sm:$0xff]
    %v429 = vld [vmem:[%s2 + $0x10] sm:$0xff]
    %v430 = vld [vmem:[%s2 + $0x18] sm:$0xff]
    %v431 = vld [vmem:[%s2 + $0x20] sm:$0xff]
    %v432 = vld [vmem:[%s2 + $0x28] sm:$0xff]
    %v433 = vld [vmem:[%s2 + $0x30] sm:$0xff]
    %v434 = vld [vmem:[%s2 + $0x38] sm:$0xff]
    %v435 = vmul.f32 %v427, %v419
    %v436 = vmul.f32 %v428, %v420
    %v437 = vmul.f32 %v429, %v421
    %v438 = vmul.f32 %v430, %v422
    %v439 = vmul.f32 %v431, %v423
    %v440 = vmul.f32 %v432, %v424
    %v441 = vmul.f32 %v433, %v425
    %v442 = vmul.f32 %v434, %v426
    %v443 = vmul.f32 %v371, %v435
    %v444 = vmul.f32 %v372, %v436
    %v445 = vmul.f32 %v373, %v437
    %v446 = vmul.f32 %v374, %v438
    %v447 = vmul.f32 %v375, %v439
    %v448 = vmul.f32 %v376, %v440
    %v449 = vmul.f32 %v377, %v441
    %v450 = vmul.f32 %v378, %v442
    %459 = vrot.lane.b32.xlu0 %v443, 1
    %v460 = vpop.permute.xlu0 %459
    %461 = vrot.lane.b32.xlu0 %v444, 1
    %v462 = vpop.permute.xlu0 %461
    %463 = vrot.lane.b32.xlu0 %v445, 1
    %v464 = vpop.permute.xlu0 %463
    %465 = vrot.lane.b32.xlu0 %v446, 1
    %v466 = vpop.permute.xlu0 %465
    %467 = vrot.lane.b32.xlu0 %v447, 1
    %v468 = vpop.permute.xlu0 %467
    %469 = vrot.lane.b32.xlu0 %v448, 1
    %v470 = vpop.permute.xlu0 %469
    %471 = vrot.lane.b32.xlu0 %v449, 1
    %v472 = vpop.permute.xlu0 %471
    %473 = vrot.lane.b32.xlu0 %v450, 1
    %v474 = vpop.permute.xlu0 %473
    %v483 = vsub.f32 %v427, %v460
    %v484 = vsub.f32 %v428, %v462
    %v485 = vsub.f32 %v429, %v464
    %v486 = vsub.f32 %v430, %v466
    %v487 = vsub.f32 %v431, %v468
    %v488 = vsub.f32 %v432, %v470
    %v489 = vsub.f32 %v433, %v472
    %v490 = vsub.f32 %v434, %v474
    %492 = vset.pattern.permute.xlu0 0
    %493 = vperm.xlu0 %492, %v435
    %v494 = vpop.permute.xlu0 %493
    %497 = vset.pattern.permute.xlu0 0
    %498 = vperm.xlu0 %497, %v436
    %v499 = vpop.permute.xlu0 %498
    %502 = vset.pattern.permute.xlu0 0
    %503 = vperm.xlu0 %502, %v437
    %v504 = vpop.permute.xlu0 %503
    %507 = vset.pattern.permute.xlu0 0
    %508 = vperm.xlu0 %507, %v438
    %v509 = vpop.permute.xlu0 %508
    %512 = vset.pattern.permute.xlu0 0
    %513 = vperm.xlu0 %512, %v439
    %v514 = vpop.permute.xlu0 %513
    %517 = vset.pattern.permute.xlu0 0
    %518 = vperm.xlu0 %517, %v440
    %v519 = vpop.permute.xlu0 %518
    %522 = vset.pattern.permute.xlu0 0
    %523 = vperm.xlu0 %522, %v441
    %v524 = vpop.permute.xlu0 %523
    %527 = vset.pattern.permute.xlu0 0
    %528 = vperm.xlu0 %527, %v442
    %v529 = vpop.permute.xlu0 %528
    %v531 = vmul.f32 %v269, %v494
    %v532 = vmul.f32 %v271, %v494
    %v533 = vmul.f32 %v273, %v499
    %v534 = vmul.f32 %v275, %v499
    %v535 = vmul.f32 %v279, %v504
    %v536 = vmul.f32 %v281, %v504
    %v537 = vmul.f32 %v283, %v509
    %v538 = vmul.f32 %v285, %v509
    %v539 = vmul.f32 %v289, %v514
    %v540 = vmul.f32 %v291, %v514
    %v541 = vmul.f32 %v293, %v519
    %v542 = vmul.f32 %v295, %v519
    %v543 = vmul.f32 %v299, %v524
    %v544 = vmul.f32 %v301, %v524
    %v545 = vmul.f32 %v303, %v529
    %v546 = vmul.f32 %v305, %v529
    %548 = vset.pattern.permute.xlu0 1
    %549 = vperm.xlu0 %548, %v483
    %v550 = vpop.permute.xlu0 %549
    %553 = vset.pattern.permute.xlu0 1
    %554 = vperm.xlu0 %553, %v484
    %v555 = vpop.permute.xlu0 %554
    %558 = vset.pattern.permute.xlu0 1
    %559 = vperm.xlu0 %558, %v485
    %v560 = vpop.permute.xlu0 %559
    %563 = vset.pattern.permute.xlu0 1
    %564 = vperm.xlu0 %563, %v486
    %v565 = vpop.permute.xlu0 %564
    %568 = vset.pattern.permute.xlu0 1
    %569 = vperm.xlu0 %568, %v487
    %v570 = vpop.permute.xlu0 %569
    %573 = vset.pattern.permute.xlu0 1
    %574 = vperm.xlu0 %573, %v488
    %v575 = vpop.permute.xlu0 %574
    %578 = vset.pattern.permute.xlu0 1
    %579 = vperm.xlu0 %578, %v489
    %v580 = vpop.permute.xlu0 %579
    %583 = vset.pattern.permute.xlu0 1
    %584 = vperm.xlu0 %583, %v490
    %v585 = vpop.permute.xlu0 %584
    %v587 = vadd.f32 %v531, %v550
    %v588 = vadd.f32 %v532, %v550
    %v589 = vadd.f32 %v533, %v555
    %v590 = vadd.f32 %v534, %v555
    %v591 = vadd.f32 %v535, %v560
    %v592 = vadd.f32 %v536, %v560
    %v593 = vadd.f32 %v537, %v565
    %v594 = vadd.f32 %v538, %v565
    %v595 = vadd.f32 %v539, %v570
    %v596 = vadd.f32 %v540, %v570
    %v597 = vadd.f32 %v541, %v575
    %v598 = vadd.f32 %v542, %v575
    %v599 = vadd.f32 %v543, %v580
    %v600 = vadd.f32 %v544, %v580
    %v601 = vadd.f32 %v545, %v585
    %v602 = vadd.f32 %v546, %v585
    %v603 = vld [vmem:[%s3] sm:$0xf]
    %v604 = vld [vmem:[%s3 + $0x4] sm:$0xf]
    %v605 = vld [vmem:[%s3 + $0x8] sm:$0xf]
    %v606 = vld [vmem:[%s3 + $0xc] sm:$0xf]
    %v607 = vld [vmem:[%s3 + $0x10] sm:$0xf]
    %v608 = vld [vmem:[%s3 + $0x14] sm:$0xf]
    %v609 = vld [vmem:[%s3 + $0x18] sm:$0xf]
    %v610 = vld [vmem:[%s3 + $0x1c] sm:$0xf]
    %v611 = vld [vmem:[%s3 + $0x20] sm:$0xf]
    %v612 = vld [vmem:[%s3 + $0x24] sm:$0xf]
    %v613 = vld [vmem:[%s3 + $0x28] sm:$0xf]
    %v614 = vld [vmem:[%s3 + $0x2c] sm:$0xf]
    %v615 = vld [vmem:[%s3 + $0x30] sm:$0xf]
    %v616 = vld [vmem:[%s3 + $0x34] sm:$0xf]
    %v617 = vld [vmem:[%s3 + $0x38] sm:$0xf]
    %v618 = vld [vmem:[%s3 + $0x3c] sm:$0xf]
    %v619 = vld [vmem:[%s3 + $0x40] sm:$0xf]
    %v620 = vld [vmem:[%s3 + $0x44] sm:$0xf]
    %v621 = vld [vmem:[%s3 + $0x48] sm:$0xf]
    %v622 = vld [vmem:[%s3 + $0x4c] sm:$0xf]
    %v623 = vld [vmem:[%s3 + $0x50] sm:$0xf]
    %v624 = vld [vmem:[%s3 + $0x54] sm:$0xf]
    %v625 = vld [vmem:[%s3 + $0x58] sm:$0xf]
    %v626 = vld [vmem:[%s3 + $0x5c] sm:$0xf]
    %v627 = vpack.c.bf16 %v589, %v587
    %v628 = vpack.c.bf16 %v590, %v588
    %v629 = vpack.c.bf16 %v593, %v591
    %v630 = vpack.c.bf16 %v594, %v592
    %v631 = vpack.c.bf16 %v597, %v595
    %v632 = vpack.c.bf16 %v598, %v596
    %v633 = vpack.c.bf16 %v601, %v599
    %v634 = vpack.c.bf16 %v602, %v600
    %v659 = vunpack.c.l.b16 %v603
    %v660 = vunpack.c.l.b16 %v604
    %v661 = vunpack.c.l.b16 %v605
    %v662 = vunpack.c.l.b16 %v606
    %v663 = vunpack.c.l.b16 %v607
    %v664 = vunpack.c.l.b16 %v608
    %v665 = vunpack.c.l.b16 %v609
    %v666 = vunpack.c.l.b16 %v610
    %v667 = vunpack.c.l.b16 %v611
    %v668 = vunpack.c.l.b16 %v612
    %v669 = vunpack.c.l.b16 %v613
    %v670 = vunpack.c.l.b16 %v614
    %v671 = vunpack.c.l.b16 %v615
    %v672 = vunpack.c.l.b16 %v616
    %v673 = vunpack.c.l.b16 %v617
    %v674 = vunpack.c.l.b16 %v618
    %v675 = vunpack.c.l.b16 %v619
    %v676 = vunpack.c.l.b16 %v620
    %v677 = vunpack.c.l.b16 %v621
    %v678 = vunpack.c.l.b16 %v622
    %v679 = vunpack.c.l.b16 %v623
    %v680 = vunpack.c.l.b16 %v624
    %v681 = vunpack.c.l.b16 %v625
    %v682 = vunpack.c.l.b16 %v626
    %v683 = vpack.c.b16 %v660, %v659
    %v684 = vpack.c.b16 %v662, %v661
    %v685 = vpack.c.b16 %v664, %v663
    %v686 = vpack.c.b16 %v666, %v665
    %v687 = vpack.c.b16 %v668, %v667
    %v688 = vpack.c.b16 %v670, %v669
    %v689 = vpack.c.b16 %v672, %v671
    %v690 = vpack.c.b16 %v674, %v673
    %v691 = vpack.c.b16 %v676, %v675
    %v692 = vpack.c.b16 %v678, %v677
    %v693 = vpack.c.b16 %v680, %v679
    %v694 = vpack.c.b16 %v682, %v681
    %v696 = vsel %vm221, %v683, 0
    %v699 = vsel %vm221, %v684, 0
    %v702 = vsel %vm221, %v685, 0
    %v705 = vsel %vm221, %v686, 0
    %v708 = vsel %vm221, %v687, 0
    %v711 = vsel %vm221, %v688, 0
    %v714 = vsel %vm221, %v689, 0
    %v717 = vsel %vm221, %v690, 0
    %v720 = vsel %vm221, %v691, 0
    %v723 = vsel %vm221, %v692, 0
    %v726 = vsel %vm221, %v693, 0
    %v729 = vsel %vm221, %v694, 0
    %731 = vmatprep.subr.bf16.mxu0 %v628
    %732 = vmatpush1.bf16.msra.mxu0 %v627
    %733 = vmatprep.subr.bf16.mxu0 %v630
    %734 = vmatpush1.bf16.msra.mxu0 %v629
    %735 = vmatprep.subr.bf16.mxu0 %v632
    %736 = vmatpush1.bf16.msra.mxu0 %v631
    %737 = vmatprep.subr.bf16.mxu0 %v634
    %738 = vmatpush1.bf16.msra.mxu0 %v633
    %739 = vmatprep.subr.bf16.mxu0 0
    %740 = vmatpush1.bf16.msra.mxu0 0
    %741 = vmatprep.subr.bf16.mxu0 0
    %742 = vmatpush1.bf16.msra.mxu0 0
    %743 = vmatprep.subr.bf16.mxu0 0
    %744 = vmatpush1.bf16.msra.mxu0 0
    %745 = vmatprep.subr.bf16.mxu0 0
    %746 = vmatpush1.bf16.msra.mxu0 0
    %747 = vmatprep.subr.bf16.mxu0 0
    %748 = vmatpush1.bf16.msra.mxu0 0
    %749 = vmatprep.subr.bf16.mxu0 0
    %750 = vmatpush1.bf16.msra.mxu0 0
    %751 = vmatprep.subr.bf16.mxu0 0
    %752 = vmatpush1.bf16.msra.mxu0 0
    %753 = vmatprep.subr.bf16.mxu0 0
    %754 = vmatpush1.bf16.msra.mxu0 0
    %755 = vmatprep.subr.bf16.mxu0 0
    %756 = vmatpush1.bf16.msra.mxu0 0
    %757 = vmatprep.subr.bf16.mxu0 0
    %758 = vmatpush1.bf16.msra.mxu0 0
    %759 = vmatprep.subr.bf16.mxu0 0
    %760 = vmatpush1.bf16.msra.mxu0 0
    %761 = vmatprep.subr.bf16.mxu0 0
    %762 = vmatpush1.bf16.msra.mxu0 0
    %763 = vmatprep.mubr.bf16.mxu0 0
    %764 = vmatmul.mubr.bf16.gmra.mrb[0].mxu0 %v696
    %v765 = vpop.f32.mrb[0].mxu0
    %v766 = vadd.f32 0.0, %v765
    %v767 = vpop.f32.mrb[0].mxu0
    %v768 = vadd.f32 0.0, %v767
    %v769 = vpop.f32.mrb[0].mxu0
    %v770 = vadd.f32 0.0, %v769
    %v771 = vpop.f32.mrb[0].mxu0
    %v772 = vadd.f32 0.0, %v771
    %773 = vmatprep.mubr.bf16.mxu0 0
    %774 = vmatmul.mubr.bf16.gmra.mrb[0].mxu0 %v699
    %v775 = vpop.f32.mrb[0].mxu0
    %v776 = vadd.f32 0.0, %v775
    %v777 = vpop.f32.mrb[0].mxu0
    %v778 = vadd.f32 0.0, %v777
    %v779 = vpop.f32.mrb[0].mxu0
    %v780 = vadd.f32 0.0, %v779
    %v781 = vpop.f32.mrb[0].mxu0
    %v782 = vadd.f32 0.0, %v781
    %783 = vmatprep.mubr.bf16.mxu0 0
    %784 = vmatmul.mubr.bf16.gmra.mrb[0].mxu0 %v702
    %v785 = vpop.f32.mrb[0].mxu0
    %v786 = vadd.f32 0.0, %v785
    %v787 = vpop.f32.mrb[0].mxu0
    %v788 = vadd.f32 0.0, %v787
    %v789 = vpop.f32.mrb[0].mxu0
    %v790 = vadd.f32 0.0, %v789
    %v791 = vpop.f32.mrb[0].mxu0
    %v792 = vadd.f32 0.0, %v791
    %793 = vmatprep.mubr.bf16.mxu0 0
    %794 = vmatmul.mubr.bf16.gmra.mrb[0].mxu0 %v705
    %v795 = vpop.f32.mrb[0].mxu0
    %v796 = vadd.f32 0.0, %v795
    %v797 = vpop.f32.mrb[0].mxu0
    %v798 = vadd.f32 0.0, %v797
    %v799 = vpop.f32.mrb[0].mxu0
    %v800 = vadd.f32 0.0, %v799
    %v801 = vpop.f32.mrb[0].mxu0
    %v802 = vadd.f32 0.0, %v801
    %803 = vmatprep.mubr.bf16.mxu0 0
    %804 = vmatmul.mubr.bf16.gmra.mrb[0].mxu0 %v708
    %v805 = vpop.f32.mrb[0].mxu0
    %v806 = vadd.f32 0.0, %v805
    %v807 = vpop.f32.mrb[0].mxu0
    %v808 = vadd.f32 0.0, %v807
    %v809 = vpop.f32.mrb[0].mxu0
    %v810 = vadd.f32 0.0, %v809
    %v811 = vpop.f32.mrb[0].mxu0
    %v812 = vadd.f32 0.0, %v811
    %813 = vmatprep.mubr.bf16.mxu0 0
    %814 = vmatmul.mubr.bf16.gmra.mrb[0].mxu0 %v711
    %v815 = vpop.f32.mrb[0].mxu0
    %v816 = vadd.f32 0.0, %v815
    %v817 = vpop.f32.mrb[0].mxu0
    %v818 = vadd.f32 0.0, %v817
    %v819 = vpop.f32.mrb[0].mxu0
    %v820 = vadd.f32 0.0, %v819
    %v821 = vpop.f32.mrb[0].mxu0
    %v822 = vadd.f32 0.0, %v821
    %823 = vmatprep.mubr.bf16.mxu0 0
    %824 = vmatmul.mubr.bf16.gmra.mrb[0].mxu0 %v714
    %v825 = vpop.f32.mrb[0].mxu0
    %v826 = vadd.f32 0.0, %v825
    %v827 = vpop.f32.mrb[0].mxu0
    %v828 = vadd.f32 0.0, %v827
    %v829 = vpop.f32.mrb[0].mxu0
    %v830 = vadd.f32 0.0, %v829
    %v831 = vpop.f32.mrb[0].mxu0
    %v832 = vadd.f32 0.0, %v831
    %833 = vmatprep.mubr.bf16.mxu0 0
    %834 = vmatmul.mubr.bf16.gmra.mrb[0].mxu0 %v717
    %v835 = vpop.f32.mrb[0].mxu0
    %v836 = vadd.f32 0.0, %v835
    %v837 = vpop.f32.mrb[0].mxu0
    %v838 = vadd.f32 0.0, %v837
    %v839 = vpop.f32.mrb[0].mxu0
    %v840 = vadd.f32 0.0, %v839
    %v841 = vpop.f32.mrb[0].mxu0
    %v842 = vadd.f32 0.0, %v841
    %843 = vmatprep.mubr.bf16.mxu0 0
    %844 = vmatmul.mubr.bf16.gmra.mrb[0].mxu0 %v720
    %v845 = vpop.f32.mrb[0].mxu0
    %v846 = vadd.f32 0.0, %v845
    %v847 = vpop.f32.mrb[0].mxu0
    %v848 = vadd.f32 0.0, %v847
    %v849 = vpop.f32.mrb[0].mxu0
    %v850 = vadd.f32 0.0, %v849
    %v851 = vpop.f32.mrb[0].mxu0
    %v852 = vadd.f32 0.0, %v851
    %853 = vmatprep.mubr.bf16.mxu0 0
    %854 = vmatmul.mubr.bf16.gmra.mrb[0].mxu0 %v723
    %v855 = vpop.f32.mrb[0].mxu0
    %v856 = vadd.f32 0.0, %v855
    %v857 = vpop.f32.mrb[0].mxu0
    %v858 = vadd.f32 0.0, %v857
    %v859 = vpop.f32.mrb[0].mxu0
    %v860 = vadd.f32 0.0, %v859
    %v861 = vpop.f32.mrb[0].mxu0
    %v862 = vadd.f32 0.0, %v861
    %863 = vmatprep.mubr.bf16.mxu0 0
    %864 = vmatmul.mubr.bf16.gmra.mrb[0].mxu0 %v726
    %v865 = vpop.f32.mrb[0].mxu0
    %v866 = vadd.f32 0.0, %v865
    %v867 = vpop.f32.mrb[0].mxu0
    %v868 = vadd.f32 0.0, %v867
    %v869 = vpop.f32.mrb[0].mxu0
    %v870 = vadd.f32 0.0, %v869
    %v871 = vpop.f32.mrb[0].mxu0
    %v872 = vadd.f32 0.0, %v871
    %873 = vmatprep.mubr.bf16.mxu0 0
    %874 = vmatmul.mubr.bf16.gmra.mrb[0].mxu0 %v729
    %v875 = vpop.f32.mrb[0].mxu0
    %v876 = vadd.f32 0.0, %v875
    %v877 = vpop.f32.mrb[0].mxu0
    %v878 = vadd.f32 0.0, %v877
    %v879 = vpop.f32.mrb[0].mxu0
    %v880 = vadd.f32 0.0, %v879
    %v881 = vpop.f32.mrb[0].mxu0
    %v882 = vadd.f32 0.0, %v881
    %883 = vdwg.mxu0
    %884 = vst [vmem:[#allocation5] sm:$0xff] %v766
    %885 = vst [vmem:[#allocation5 + $0x8] sm:$0xff] %v768
    %886 = vst [vmem:[#allocation5 + $0x10] sm:$0xff] %v770
    %887 = vst [vmem:[#allocation5 + $0x18] sm:$0xff] %v772
    %888 = vst [vmem:[#allocation5 + $0x20] sm:$0xff] %v776
    %889 = vst [vmem:[#allocation5 + $0x28] sm:$0xff] %v778
    %890 = vst [vmem:[#allocation5 + $0x30] sm:$0xff] %v780
    %891 = vst [vmem:[#allocation5 + $0x38] sm:$0xff] %v782
    %892 = vst [vmem:[#allocation5 + $0x40] sm:$0xff] %v786
    %893 = vst [vmem:[#allocation5 + $0x48] sm:$0xff] %v788
    %894 = vst [vmem:[#allocation5 + $0x50] sm:$0xff] %v790
    %895 = vst [vmem:[#allocation5 + $0x58] sm:$0xff] %v792
    %896 = vst [vmem:[#allocation5 + $0x60] sm:$0xff] %v796
    %897 = vst [vmem:[#allocation5 + $0x68] sm:$0xff] %v798
    %898 = vst [vmem:[#allocation5 + $0x70] sm:$0xff] %v800
    %899 = vst [vmem:[#allocation5 + $0x78] sm:$0xff] %v802
    %900 = vst [vmem:[#allocation5 + $0x80] sm:$0xff] %v806
    %901 = vst [vmem:[#allocation5 + $0x88] sm:$0xff] %v808
    %902 = vst [vmem:[#allocation5 + $0x90] sm:$0xff] %v810
    %903 = vst [vmem:[#allocation5 + $0x98] sm:$0xff] %v812
    %904 = vst [vmem:[#allocation5 + $0xa0] sm:$0xff] %v816
    %905 = vst [vmem:[#allocation5 + $0xa8] sm:$0xff] %v818
    %906 = vst [vmem:[#allocation5 + $0xb0] sm:$0xff] %v820
    %907 = vst [vmem:[#allocation5 + $0xb8] sm:$0xff] %v822
    %908 = vst [vmem:[#allocation5 + $0xc0] sm:$0xff] %v826
    %909 = vst [vmem:[#allocation5 + $0xc8] sm:$0xff] %v828
    %910 = vst [vmem:[#allocation5 + $0xd0] sm:$0xff] %v830
    %911 = vst [vmem:[#allocation5 + $0xd8] sm:$0xff] %v832
    %912 = vst [vmem:[#allocation5 + $0xe0] sm:$0xff] %v836
    %913 = vst [vmem:[#allocation5 + $0xe8] sm:$0xff] %v838
    %914 = vst [vmem:[#allocation5 + $0xf0] sm:$0xff] %v840
    %915 = vst [vmem:[#allocation5 + $0xf8] sm:$0xff] %v842
    %916 = vst [vmem:[#allocation5 + $0x100] sm:$0xff] %v846
    %917 = vst [vmem:[#allocation5 + $0x108] sm:$0xff] %v848
    %918 = vst [vmem:[#allocation5 + $0x110] sm:$0xff] %v850
    %919 = vst [vmem:[#allocation5 + $0x118] sm:$0xff] %v852
    %920 = vst [vmem:[#allocation5 + $0x120] sm:$0xff] %v856
    %921 = vst [vmem:[#allocation5 + $0x128] sm:$0xff] %v858
    %922 = vst [vmem:[#allocation5 + $0x130] sm:$0xff] %v860
    %923 = vst [vmem:[#allocation5 + $0x138] sm:$0xff] %v862
    %924 = vst [vmem:[#allocation5 + $0x140] sm:$0xff] %v866
    %925 = vst [vmem:[#allocation5 + $0x148] sm:$0xff] %v868
    %926 = vst [vmem:[#allocation5 + $0x150] sm:$0xff] %v870
    %927 = vst [vmem:[#allocation5 + $0x158] sm:$0xff] %v872
    %928 = vst [vmem:[#allocation5 + $0x160] sm:$0xff] %v876
    %929 = vst [vmem:[#allocation5 + $0x168] sm:$0xff] %v878
    %930 = vst [vmem:[#allocation5 + $0x170] sm:$0xff] %v880
    %931 = vst [vmem:[#allocation5 + $0x178] sm:$0xff] %v882
    // Predicated region
    $region22: #{tpu_custom_call.1} parent=1 // pred_check
      _
    $region23: #{tpu_custom_call.1} parent=1 // pred_check_branch
      %933 = sbr.rel (0) target = $region25
    $region24: #{tpu_custom_call.1} parent=1 // pred_region
      %s935 = ssub.s32 6144, 6144
      %936 = vsyncadd [#allocation4], %s935
      %s937 = sshll.u32 [#allocation5], 4
      %s938 = int_to_ptr.vmem [resolvable:$true] %s937
      %943 = dma.vmem_to_hbm [thread:$0]  %s938, 6144, %s4, [#allocation4], 256, 256, 16
    $region25: #{tpu_custom_call.1} parent=1 // pred_fallthru
      _
    // Predicated region
    $region26: #{tpu_custom_call.1} parent=1 // pred_check
      _
    $region27: #{tpu_custom_call.1} parent=1 // pred_check_branch
      %945 = sbr.rel (0) target = $region29
    $region28: #{tpu_custom_call.1} parent=1 // pred_region
      %946 = dma.done [#allocation4], 6144
    $region29: #{tpu_custom_call.1} parent=1 // pred_fallthru
      _
    %947 = vsyncpa [#allocation3], 1
    %948 = vsyncpa [#allocation4], 1

</llo_original>
